<compile_context>
chip_gen: v7x
topology: tpu7x:2x2x1
jax: 0.10.0
libtpu: 0.0.40
codegen_flags: <defaults>
</compile_context>

<pallas_src>
import jax
import jax.numpy as jnp
from jax.experimental import pallas as pl
from jax.experimental.pallas import tpu as pltpu


def _round_up(v, m):
    return ((v + m - 1) // m) * m


def _pad2(a, rows, cols):
    out = jnp.zeros((rows, cols), a.dtype)
    return out.at[: a.shape[0], : a.shape[1]].set(a)


def _fused_gin_kernel(a_ref, p_ref, x_ref, w1_ref, s1_ref, wcat_ref, b2_ref,
                      o_ref):
    """Whole GIN forward in one invocation; layer loop unrolled in-kernel."""
    bf = jnp.bfloat16
    num_layers, _, fp = w1_ref.shape        # wcat is (L, fp, fp + op)

    a_mat = a_ref[...]                      # (np, np)   bf16, hoisted
    h = x_ref[...]                          # (np, fp)   bf16 node features
    acc = None                              # (np, op)   f32 head accumulator

    for l in range(num_layers):
        # GINConv (train_eps=False, eps=0):  agg = (A + I) @ h   [MXU, f32 acc]
        agg = jnp.dot(a_mat, h, preferred_element_type=jnp.float32)
        # MLP Linear-1 with BN scale folded into w1, folded shift, ReLU
        z1 = jnp.dot(agg.astype(bf), w1_ref[l],
                     preferred_element_type=jnp.float32) + s1_ref[l]
        h1 = jnp.maximum(z1, 0.0).astype(bf)
        # One 256-lane matmul: columns [:fp] = h1 @ w2, [fp:] = h1 @ (w2 @ wo)
        big = jnp.dot(h1, wcat_ref[l], preferred_element_type=jnp.float32)
        h = (big[:, :fp] + b2_ref[l]).astype(bf)        # next-layer features
        contrib = big[:, fp:]                            # head contribution
        acc = contrib if acc is None else acc + contrib

    # sum_l Lin_l(global_add_pool(h_l)) (minus per-graph bias, added in wrapper)
    o_ref[...] = jnp.dot(p_ref[...], acc.astype(bf),
                         preferred_element_type=jnp.float32)


def gin_paper_forward(params, x, edge_index, batch, num_graphs, bn_eps=1e-5):
    """Eval-mode forward of GINPaper via one fused grid-less Pallas call."""
    n, c = x.shape
    hidden = params[0]["w1"].shape[1]
    out = params[0]["wo"].shape[1]

    np_ = _round_up(n, 16)                 # node (sublane) padding, bf16 pack
    gp = _round_up(num_graphs, 16)         # graph (sublane) padding
    fp = _round_up(max(c, hidden), 128)    # common padded feature width (lanes)
    op = _round_up(out, 128)               # padded output width (lanes)

    # Dense A_hat = A + (1+eps) I (eps=0) and one-hot pooling matrix P — exact
    # small integers, lossless in bf16 at these graph sizes.
    a = jnp.zeros((np_, np_), jnp.float32)
    a = a.at[edge_index[1], edge_index[0]].add(1.0)
    a = a.at[jnp.arange(n), jnp.arange(n)].add(1.0)
    a_hat = a.astype(jnp.bfloat16)
    pool_mat = (jnp.zeros((gp, np_), jnp.float32)
                .at[batch, jnp.arange(n)].set(1.0)
                .astype(jnp.bfloat16))

    x_pad = _pad2(x, np_, fp).astype(jnp.bfloat16)     # layer-0 features

    # Pack per-layer weights: fold BN+bias into w1/shift; lane-concat w2 with
    # (w2 @ wo) so the kernel does ONE 256-wide matmul for Linear-2 + head.
    w1s, s1s, wcats, b2s = [], [], [], []
    bo_sum = jnp.zeros((1, out), jnp.float32)          # sum_l bo_l
    b2wo_sum = jnp.zeros((1, out), jnp.float32)        # sum_l b2_l @ wo_l
    for p in params:
        scale = p["gamma"] / jnp.sqrt(p["run_var"] + bn_eps)          # [1, H]
        shift = p["b1"] * scale + p["beta"] - p["run_mean"] * scale   # [1, H]
        w1s.append(_pad2(p["w1"] * scale, fp, fp).astype(jnp.bfloat16))
        s1s.append(_pad2(shift, 1, fp))
        w2wo = p["w2"] @ p["wo"]                                      # [H, OUT]
        wcat = jnp.concatenate(
            [_pad2(p["w2"], fp, fp), _pad2(w2wo, fp, op)], axis=1)
        wcats.append(wcat.astype(jnp.bfloat16))
        b2s.append(_pad2(p["b2"], 1, fp))
        bo_sum = bo_sum + p["bo"]
        b2wo_sum = b2wo_sum + p["b2"] @ p["wo"]
    w1s, s1s, wcats, b2s = map(jnp.stack, (w1s, s1s, wcats, b2s))

    vmem = pl.BlockSpec(memory_space=pltpu.MemorySpace.VMEM)
    out_pad = pl.pallas_call(
        _fused_gin_kernel,
        out_shape=jax.ShapeDtypeStruct((gp, op), jnp.float32),
        in_specs=[vmem] * 7,               # whole arrays VMEM-resident, no grid
        out_specs=vmem,
    )(a_hat, pool_mat, x_pad, w1s, s1s, wcats, b2s)

    # Per-graph bias: the kernel's head path omits b2 -> add count_g * (b2@wo),
    # plus the output-layer biases bo, here in the wrapper (no kernel operand).
    counts = jnp.zeros((num_graphs,), jnp.float32).at[batch].add(1.0)
    return (out_pad[:num_graphs, :out]
            + bo_sum
            + counts[:, None] * b2wo_sum)


def init_params(key, in_channels, hidden, out, num_layers):
    """Deterministic synthetic parameters matching the module's shapes."""
    params = []
    for i in range(num_layers):
        cin = in_channels if i == 0 else hidden
        key, *ks = jax.random.split(key, 10)
        params.append(dict(
            w1=jax.random.normal(ks[0], (cin, hidden), jnp.float32) / jnp.sqrt(cin),
            b1=0.01 * jax.random.normal(ks[1], (1, hidden), jnp.float32),
            gamma=1.0 + 0.1 * jax.random.normal(ks[2], (1, hidden), jnp.float32),
            beta=0.1 * jax.random.normal(ks[3], (1, hidden), jnp.float32),
            run_mean=0.1 * jax.random.normal(ks[4], (1, hidden), jnp.float32),
            run_var=1.0 + 0.2 * jax.random.uniform(ks[5], (1, hidden), jnp.float32),
            w2=jax.random.normal(ks[6], (hidden, hidden), jnp.float32) / jnp.sqrt(hidden),
            b2=0.01 * jax.random.normal(ks[7], (1, hidden), jnp.float32),
            wo=jax.random.normal(ks[8], (hidden, out), jnp.float32) / jnp.sqrt(hidden),
            bo=0.01 * jnp.ones((1, out), jnp.float32),
        ))
    return params


def _reference_f32(params, x, edge_index, batch, num_graphs, bn_eps=1e-5):
    """Module-faithful eval-mode reference in pure f32 (unfolded BN)."""
    n = x.shape[0]
    a = jnp.zeros((n, n), jnp.float32).at[edge_index[1], edge_index[0]].add(1.0)
    a_hat = a + jnp.eye(n, dtype=jnp.float32)
    pool = (batch[None, :] == jnp.arange(num_graphs)[:, None]).astype(jnp.float32)
    score = 0.0
    h = x
    for p in params:
        z1 = (a_hat @ h) @ p["w1"] + p["b1"]
        z1 = (z1 - p["run_mean"]) / jnp.sqrt(p["run_var"] + bn_eps) * p["gamma"] + p["beta"]
        h = jnp.maximum(z1, 0.0) @ p["w2"] + p["b2"]
        score = score + (pool @ h) @ p["wo"] + p["bo"]
    return score


def _reference_mixed(params, x, edge_index, batch, num_graphs, bn_eps=1e-5):
    """Pure-JAX mirror of the kernel's numeric recipe (bf16 matmul operands,
    f32 accumulation, folded BN, w2||(w2@wo) concat, restructured pooling)."""
    bf = jnp.bfloat16
    dot = lambda a, b: jnp.dot(a.astype(bf), b.astype(bf),
                               preferred_element_type=jnp.float32)
    n = x.shape[0]
    out = params[0]["wo"].shape[1]
    a = jnp.zeros((n, n), jnp.float32).at[edge_index[1], edge_index[0]].add(1.0)
    a_hat = a + jnp.eye(n, dtype=jnp.float32)
    pool = (batch[None, :] == jnp.arange(num_graphs)[:, None]).astype(jnp.float32)
    counts = pool.sum(axis=1)
    h = x
    acc = jnp.zeros((n, out), jnp.float32)
    bo_sum = jnp.zeros((1, out), jnp.float32)
    b2wo_sum = jnp.zeros((1, out), jnp.float32)
    for p in params:
        scale = p["gamma"] / jnp.sqrt(p["run_var"] + bn_eps)
        shift = p["b1"] * scale + p["beta"] - p["run_mean"] * scale
        agg = dot(a_hat, h)
        h1 = jnp.maximum(dot(agg, p["w1"] * scale) + shift, 0.0)
        acc = acc + dot(h1, p["w2"] @ p["wo"])
        h = dot(h1, p["w2"]) + p["b2"]
        bo_sum = bo_sum + p["bo"]
        b2wo_sum = b2wo_sum + p["b2"] @ p["wo"]
    return dot(pool, acc) + bo_sum + counts[:, None] * b2wo_sum


if __name__ == "__main__":
    N, E = 32, 96                    # nodes, edges
    IN_CH, HIDDEN, OUT = 16, 32, 8   # in_channels, hidden_channels, out
    NUM_LAYERS = 3
    NUM_GRAPHS = 4
    DROPOUT = 0.5                    # identity at inference (training=False)

    key = jax.random.PRNGKey(0)
    kx, ke, kp = jax.random.split(key, 3)
    x = jax.random.normal(kx, (N, IN_CH), jnp.float32)
    edge_index = jax.random.randint(ke, (2, E), 0, N, dtype=jnp.int32)
    batch = jnp.sort(jax.random.randint(kp, (N,), 0, NUM_GRAPHS, dtype=jnp.int32))

    params = init_params(jax.random.PRNGKey(42), IN_CH, HIDDEN, OUT, NUM_LAYERS)

    out = jax.block_until_ready(
        gin_paper_forward(params, x, edge_index, batch, NUM_GRAPHS))
    assert out.shape == (NUM_GRAPHS, OUT)

    # Tight check vs. a reference following the same mixed-precision recipe.
    ref_mixed = _reference_mixed(params, x, edge_index, batch, NUM_GRAPHS)
    assert jnp.allclose(out, ref_mixed, atol=1e-3, rtol=1e-3), \
        "Pallas result mismatches mixed-precision reference"

    # Sanity check vs. the module-faithful f32 reference (bf16 weight rounding
    # gives a small relative error).
    ref_f32 = _reference_f32(params, x, edge_index, batch, NUM_GRAPHS)
    max_err = jnp.max(jnp.abs(out - ref_f32))
    assert max_err <= 5e-2 * (1.0 + jnp.max(jnp.abs(ref_f32))), \
        "Pallas result too far from f32 module reference"

    print("KERNEL_OK")
</pallas_src>

<mosaic_0001>
module attributes {stable_mosaic.version = 11 : i64} {
  func.func @_fused_gin_kernel(%arg0: memref<32x32xbf16, #tpu.memory_space<vmem>>, %arg1: memref<16x32xbf16, #tpu.memory_space<vmem>>, %arg2: memref<32x128xbf16, #tpu.memory_space<vmem>>, %arg3: memref<3x128x128xbf16, #tpu.memory_space<vmem>>, %arg4: memref<3x1x128xf32, #tpu.memory_space<vmem>>, %arg5: memref<3x128x256xbf16, #tpu.memory_space<vmem>>, %arg6: memref<3x1x128xf32, #tpu.memory_space<vmem>>, %arg7: memref<16x128xf32, #tpu.memory_space<vmem>>) attributes {dimension_semantics = [], scalar_prefetch = 0 : i64, scratch_operands = 0 : i64, tpu.core_type = #tpu.core_type<tc>} {
    %c0 = arith.constant 0 : index
    %c0_0 = arith.constant 0 : index
    %0 = vector.load %arg0[%c0, %c0_0] : memref<32x32xbf16, #tpu.memory_space<vmem>>, vector<32x32xbf16>
    %c0_1 = arith.constant 0 : index
    %c0_2 = arith.constant 0 : index
    %1 = vector.load %arg2[%c0_1, %c0_2] : memref<32x128xbf16, #tpu.memory_space<vmem>>, vector<32x128xbf16>
    %cst = arith.constant dense<0.000000e+00> : vector<32x128xf32>
    %2 = tpu.matmul %0, %1, %cst {dimension_numbers = #tpu.dot_dimension_numbers<[1], [0], [0], [1], [0, 0, 1, 1], [], []>} : vector<32x32xbf16>, vector<32x128xbf16>, vector<32x128xf32> -> vector<32x128xf32>
    %3 = arith.truncf %2 : vector<32x128xf32> to vector<32x128xbf16>
    %c0_3 = arith.constant 0 : index
    %c0_4 = arith.constant 0 : index
    %c0_5 = arith.constant 0 : index
    %4 = vector.load %arg3[%c0_3, %c0_4, %c0_5] : memref<3x128x128xbf16, #tpu.memory_space<vmem>>, vector<1x128x128xbf16>
    %5 = vector.shape_cast %4 : vector<1x128x128xbf16> to vector<128x128xbf16>
    %cst_6 = arith.constant dense<0.000000e+00> : vector<32x128xf32>
    %6 = tpu.matmul %3, %5, %cst_6 {dimension_numbers = #tpu.dot_dimension_numbers<[1], [0], [0], [1], [0, 0, 1, 1], [], []>} : vector<32x128xbf16>, vector<128x128xbf16>, vector<32x128xf32> -> vector<32x128xf32>
    %c0_7 = arith.constant 0 : index
    %c0_8 = arith.constant 0 : index
    %c0_9 = arith.constant 0 : index
    %7 = vector.load %arg4[%c0_7, %c0_8, %c0_9] : memref<3x1x128xf32, #tpu.memory_space<vmem>>, vector<1x1x128xf32>
    %8 = vector.shape_cast %7 : vector<1x1x128xf32> to vector<1x128xf32>
    %9 = vector.broadcast %8 : vector<1x128xf32> to vector<32x128xf32>
    %10 = arith.addf %6, %9 : vector<32x128xf32>
    %cst_10 = arith.constant 0.000000e+00 : f32
    %11 = vector.broadcast %cst_10 : f32 to vector<32x128xf32>
    %12 = arith.maximumf %10, %11 : vector<32x128xf32>
    %13 = arith.truncf %12 : vector<32x128xf32> to vector<32x128xbf16>
    %c0_11 = arith.constant 0 : index
    %c0_12 = arith.constant 0 : index
    %c0_13 = arith.constant 0 : index
    %14 = vector.load %arg5[%c0_11, %c0_12, %c0_13] : memref<3x128x256xbf16, #tpu.memory_space<vmem>>, vector<1x128x256xbf16>
    %15 = vector.shape_cast %14 : vector<1x128x256xbf16> to vector<128x256xbf16>
    %cst_14 = arith.constant dense<0.000000e+00> : vector<32x256xf32>
    %16 = tpu.matmul %13, %15, %cst_14 {dimension_numbers = #tpu.dot_dimension_numbers<[1], [0], [0], [1], [0, 0, 1, 1], [], []>} : vector<32x128xbf16>, vector<128x256xbf16>, vector<32x256xf32> -> vector<32x256xf32>
    %17 = vector.extract_strided_slice %16 {offsets = [0, 0], sizes = [32, 128], strides = [1, 1]} : vector<32x256xf32> to vector<32x128xf32>
    %c0_15 = arith.constant 0 : index
    %c0_16 = arith.constant 0 : index
    %c0_17 = arith.constant 0 : index
    %18 = vector.load %arg6[%c0_15, %c0_16, %c0_17] : memref<3x1x128xf32, #tpu.memory_space<vmem>>, vector<1x1x128xf32>
    %19 = vector.shape_cast %18 : vector<1x1x128xf32> to vector<1x128xf32>
    %20 = vector.broadcast %19 : vector<1x128xf32> to vector<32x128xf32>
    %21 = arith.addf %17, %20 : vector<32x128xf32>
    %22 = arith.truncf %21 : vector<32x128xf32> to vector<32x128xbf16>
    %23 = vector.extract_strided_slice %16 {offsets = [0, 128], sizes = [32, 128], strides = [1, 1]} : vector<32x256xf32> to vector<32x128xf32>
    %cst_18 = arith.constant dense<0.000000e+00> : vector<32x128xf32>
    %24 = tpu.matmul %0, %22, %cst_18 {dimension_numbers = #tpu.dot_dimension_numbers<[1], [0], [0], [1], [0, 0, 1, 1], [], []>} : vector<32x32xbf16>, vector<32x128xbf16>, vector<32x128xf32> -> vector<32x128xf32>
    %25 = arith.truncf %24 : vector<32x128xf32> to vector<32x128xbf16>
    %c1 = arith.constant 1 : index
    %c0_19 = arith.constant 0 : index
    %c0_20 = arith.constant 0 : index
    %26 = vector.load %arg3[%c1, %c0_19, %c0_20] : memref<3x128x128xbf16, #tpu.memory_space<vmem>>, vector<1x128x128xbf16>
    %27 = vector.shape_cast %26 : vector<1x128x128xbf16> to vector<128x128xbf16>
    %cst_21 = arith.constant dense<0.000000e+00> : vector<32x128xf32>
    %28 = tpu.matmul %25, %27, %cst_21 {dimension_numbers = #tpu.dot_dimension_numbers<[1], [0], [0], [1], [0, 0, 1, 1], [], []>} : vector<32x128xbf16>, vector<128x128xbf16>, vector<32x128xf32> -> vector<32x128xf32>
    %c1_22 = arith.constant 1 : index
    %c0_23 = arith.constant 0 : index
    %c0_24 = arith.constant 0 : index
    %29 = vector.load %arg4[%c1_22, %c0_23, %c0_24] : memref<3x1x128xf32, #tpu.memory_space<vmem>>, vector<1x1x128xf32>
    %30 = vector.shape_cast %29 : vector<1x1x128xf32> to vector<1x128xf32>
    %31 = vector.broadcast %30 : vector<1x128xf32> to vector<32x128xf32>
    %32 = arith.addf %28, %31 : vector<32x128xf32>
    %cst_25 = arith.constant 0.000000e+00 : f32
    %33 = vector.broadcast %cst_25 : f32 to vector<32x128xf32>
    %34 = arith.maximumf %32, %33 : vector<32x128xf32>
    %35 = arith.truncf %34 : vector<32x128xf32> to vector<32x128xbf16>
    %c1_26 = arith.constant 1 : index
    %c0_27 = arith.constant 0 : index
    %c0_28 = arith.constant 0 : index
    %36 = vector.load %arg5[%c1_26, %c0_27, %c0_28] : memref<3x128x256xbf16, #tpu.memory_space<vmem>>, vector<1x128x256xbf16>
    %37 = vector.shape_cast %36 : vector<1x128x256xbf16> to vector<128x256xbf16>
    %cst_29 = arith.constant dense<0.000000e+00> : vector<32x256xf32>
    %38 = tpu.matmul %35, %37, %cst_29 {dimension_numbers = #tpu.dot_dimension_numbers<[1], [0], [0], [1], [0, 0, 1, 1], [], []>} : vector<32x128xbf16>, vector<128x256xbf16>, vector<32x256xf32> -> vector<32x256xf32>
    %39 = vector.extract_strided_slice %38 {offsets = [0, 0], sizes = [32, 128], strides = [1, 1]} : vector<32x256xf32> to vector<32x128xf32>
    %c1_30 = arith.constant 1 : index
    %c0_31 = arith.constant 0 : index
    %c0_32 = arith.constant 0 : index
    %40 = vector.load %arg6[%c1_30, %c0_31, %c0_32] : memref<3x1x128xf32, #tpu.memory_space<vmem>>, vector<1x1x128xf32>
    %41 = vector.shape_cast %40 : vector<1x1x128xf32> to vector<1x128xf32>
    %42 = vector.broadcast %41 : vector<1x128xf32> to vector<32x128xf32>
    %43 = arith.addf %39, %42 : vector<32x128xf32>
    %44 = arith.truncf %43 : vector<32x128xf32> to vector<32x128xbf16>
    %45 = vector.extract_strided_slice %38 {offsets = [0, 128], sizes = [32, 128], strides = [1, 1]} : vector<32x256xf32> to vector<32x128xf32>
    %46 = arith.addf %23, %45 : vector<32x128xf32>
    %cst_33 = arith.constant dense<0.000000e+00> : vector<32x128xf32>
    %47 = tpu.matmul %0, %44, %cst_33 {dimension_numbers = #tpu.dot_dimension_numbers<[1], [0], [0], [1], [0, 0, 1, 1], [], []>} : vector<32x32xbf16>, vector<32x128xbf16>, vector<32x128xf32> -> vector<32x128xf32>
    %48 = arith.truncf %47 : vector<32x128xf32> to vector<32x128xbf16>
    %c2 = arith.constant 2 : index
    %c0_34 = arith.constant 0 : index
    %c0_35 = arith.constant 0 : index
    %49 = vector.load %arg3[%c2, %c0_34, %c0_35] : memref<3x128x128xbf16, #tpu.memory_space<vmem>>, vector<1x128x128xbf16>
    %50 = vector.shape_cast %49 : vector<1x128x128xbf16> to vector<128x128xbf16>
    %cst_36 = arith.constant dense<0.000000e+00> : vector<32x128xf32>
    %51 = tpu.matmul %48, %50, %cst_36 {dimension_numbers = #tpu.dot_dimension_numbers<[1], [0], [0], [1], [0, 0, 1, 1], [], []>} : vector<32x128xbf16>, vector<128x128xbf16>, vector<32x128xf32> -> vector<32x128xf32>
    %c2_37 = arith.constant 2 : index
    %c0_38 = arith.constant 0 : index
    %c0_39 = arith.constant 0 : index
    %52 = vector.load %arg4[%c2_37, %c0_38, %c0_39] : memref<3x1x128xf32, #tpu.memory_space<vmem>>, vector<1x1x128xf32>
    %53 = vector.shape_cast %52 : vector<1x1x128xf32> to vector<1x128xf32>
    %54 = vector.broadcast %53 : vector<1x128xf32> to vector<32x128xf32>
    %55 = arith.addf %51, %54 : vector<32x128xf32>
    %cst_40 = arith.constant 0.000000e+00 : f32
    %56 = vector.broadcast %cst_40 : f32 to vector<32x128xf32>
    %57 = arith.maximumf %55, %56 : vector<32x128xf32>
    %58 = arith.truncf %57 : vector<32x128xf32> to vector<32x128xbf16>
    %c2_41 = arith.constant 2 : index
    %c0_42 = arith.constant 0 : index
    %c0_43 = arith.constant 0 : index
    %59 = vector.load %arg5[%c2_41, %c0_42, %c0_43] : memref<3x128x256xbf16, #tpu.memory_space<vmem>>, vector<1x128x256xbf16>
    %60 = vector.shape_cast %59 : vector<1x128x256xbf16> to vector<128x256xbf16>
    %cst_44 = arith.constant dense<0.000000e+00> : vector<32x256xf32>
    %61 = tpu.matmul %58, %60, %cst_44 {dimension_numbers = #tpu.dot_dimension_numbers<[1], [0], [0], [1], [0, 0, 1, 1], [], []>} : vector<32x128xbf16>, vector<128x256xbf16>, vector<32x256xf32> -> vector<32x256xf32>
    %62 = vector.extract_strided_slice %61 {offsets = [0, 128], sizes = [32, 128], strides = [1, 1]} : vector<32x256xf32> to vector<32x128xf32>
    %63 = arith.addf %46, %62 : vector<32x128xf32>
    %c0_45 = arith.constant 0 : index
    %c0_46 = arith.constant 0 : index
    %64 = vector.load %arg1[%c0_45, %c0_46] : memref<16x32xbf16, #tpu.memory_space<vmem>>, vector<16x32xbf16>
    %65 = arith.truncf %63 : vector<32x128xf32> to vector<32x128xbf16>
    %cst_47 = arith.constant dense<0.000000e+00> : vector<16x128xf32>
    %66 = tpu.matmul %64, %65, %cst_47 {dimension_numbers = #tpu.dot_dimension_numbers<[1], [0], [0], [1], [0, 0, 1, 1], [], []>} : vector<16x32xbf16>, vector<32x128xbf16>, vector<16x128xf32> -> vector<16x128xf32>
    %c0_48 = arith.constant 0 : index
    %c0_49 = arith.constant 0 : index
    %67 = vector.load %arg7[%c0_48, %c0_49] : memref<16x128xf32, #tpu.memory_space<vmem>>, vector<16x128xf32>
    tpu.vector_store %arg7[%c0_48, %c0_49], %66 {strides = array<i32>} : memref<16x128xf32, #tpu.memory_space<vmem>>, vector<16x128xf32>,
    return
  }
}

</mosaic_0001>

<llo_original>
// kernel: tpu_custom_call.1
$region0: #{tpu_custom_call.1}
  #allocation0 [shape = 'u32[]', space=smem, size = 0x4, offset = 0x4, fixed_abs, tag = 'smem constant byte address 0x4 - core index']
  #allocation1 [shape = 'u32[144,128]{1,0:T(1,128)}', space=vmem, size = 0x12000, scoped, tag = 'internal scratch']
  %s0 = inlined_call_operand.hbm [shape: bf16[32,32], index: 0, kind: input, shape index: {}]
  %s1 = inlined_call_operand.hbm [shape: bf16[16,32], index: 1, kind: input, shape index: {}]
  %s2 = inlined_call_operand.hbm [shape: bf16[32,128], index: 2, kind: input, shape index: {}]
  %s3 = inlined_call_operand.hbm [shape: bf16[3,128,128], index: 3, kind: input, shape index: {}]
  %s4 = inlined_call_operand.vmem [shape: f32[3,1,128], index: 4, kind: input, shape index: {}]
  %s5 = inlined_call_operand.hbm [shape: bf16[3,128,256], index: 5, kind: input, shape index: {}]
  %s6 = inlined_call_operand.vmem [shape: f32[3,1,128], index: 6, kind: input, shape index: {}]
  %s7 = inlined_call_operand.hbm [shape: f32[16,128], index: 7, kind: output, shape index: {}]
  %s8 = sld [smem:[#allocation0]]
  $region58: #{tpu_custom_call.1} parent=0
    _
  %s10 = ssub.s32 1, %s8
  %s11 = scalar_select 0, %s10, %s8
  $region1: #{tpu_custom_call.1} parent=0
    #allocation2 [shape = 'u8[8192]{0}', space=vmem, size = 0x2000, scoped, tag = 'input window, operand 0, single buffered']
    #allocation3 [shape = 's32[1]{0}', space=sflag, size = 0x4, scoped, tag = 'scoped memory for tpu_custom_call.1']
    #allocation4 [shape = 's32[1]{0}', space=sflag, size = 0x4, scoped, tag = 'scoped memory for tpu_custom_call.1']
    #allocation5 [shape = 'u8[4096]{0}', space=vmem, size = 0x1000, scoped, tag = 'input window, operand 1, single buffered']
    #allocation6 [shape = 's32[1]{0}', space=sflag, size = 0x4, scoped, tag = 'scoped memory for tpu_custom_call.1']
    #allocation7 [shape = 'u8[8192]{0}', space=vmem, size = 0x2000, scoped, tag = 'input window, operand 2, single buffered']
    #allocation8 [shape = 'u8[98304]{0}', space=vmem, size = 0x18000, scoped, tag = 'input window, operand 3, single buffered']
    #allocation9 [shape = 's32[1]{0}', space=sflag, size = 0x4, scoped, tag = 'scoped memory for tpu_custom_call.1']
    #allocation10 [shape = 'u8[196608]{0}', space=vmem, size = 0x30000, scoped, tag = 'input window, operand 5, single buffered']
    #allocation11 [shape = 'u8[8192]{0}', space=vmem, size = 0x2000, scoped, tag = 'output window, operand 0, single buffered']
    %12 = vsyncpa [#allocation3], 0
    %13 = vsyncpa [#allocation6], 0
    %14 = vsyncpa [#allocation9], 0
    %15 = vsyncpa [#allocation4], 0
    // Predicated region
    $region2: #{tpu_custom_call.1} parent=1 // pred_check
      _
    $region3: #{tpu_custom_call.1} parent=1 // pred_check_branch
      %17 = sbr.rel (0) target = $region5
    $region4: #{tpu_custom_call.1} parent=1 // pred_region
      %s19 = ssub.s32 256, 256
      %20 = vsyncadd [#allocation3], %s19
      %s21 = sshll.u32 [#allocation2], 4
      %s22 = int_to_ptr.vmem [resolvable:$true] %s21
      %27 = dma.hbm_to_vmem [thread:$0]  %s0, 256, %s22, [#allocation3], 64, 64, 4
    $region5: #{tpu_custom_call.1} parent=1 // pred_fallthru
      _
    // Predicated region
    $region6: #{tpu_custom_call.1} parent=1 // pred_check
      _
    $region7: #{tpu_custom_call.1} parent=1 // pred_check_branch
      %29 = sbr.rel (0) target = $region9
    $region8: #{tpu_custom_call.1} parent=1 // pred_region
      %s31 = ssub.s32 128, 128
      %32 = vsyncadd [#allocation6], %s31
      %s33 = sshll.u32 [#allocation5], 4
      %s34 = int_to_ptr.vmem [resolvable:$true] %s33
      %39 = dma.hbm_to_vmem [thread:$0]  %s1, 128, %s34, [#allocation6], 64, 64, 4
    $region9: #{tpu_custom_call.1} parent=1 // pred_fallthru
      _
    // Predicated region
    $region10: #{tpu_custom_call.1} parent=1 // pred_check
      _
    $region11: #{tpu_custom_call.1} parent=1 // pred_check_branch
      %41 = sbr.rel (0) target = $region13
    $region12: #{tpu_custom_call.1} parent=1 // pred_region
      %s43 = ssub.s32 256, 256
      %44 = vsyncadd [#allocation6], %s43
      %s45 = sshll.u32 [#allocation7], 4
      %s46 = int_to_ptr.vmem [resolvable:$true] %s45
      %51 = dma.hbm_to_vmem [thread:$0]  %s2, 256, %s46, [#allocation6], 64, 64, 4
    $region13: #{tpu_custom_call.1} parent=1 // pred_fallthru
      _
    // Predicated region
    $region14: #{tpu_custom_call.1} parent=1 // pred_check
      _
    $region15: #{tpu_custom_call.1} parent=1 // pred_check_branch
      %53 = sbr.rel (0) target = $region17
    $region16: #{tpu_custom_call.1} parent=1 // pred_region
      %s55 = ssub.s32 3072, 3072
      %56 = vsyncadd [#allocation9], %s55
      %s57 = sshll.u32 [#allocation8], 4
      %s58 = int_to_ptr.vmem [resolvable:$true] %s57
      %63 = dma.hbm_to_vmem [thread:$0]  %s3, 3072, %s58, [#allocation9], 64, 64, 4
    $region17: #{tpu_custom_call.1} parent=1 // pred_fallthru
      _
    // Predicated region
    $region18: #{tpu_custom_call.1} parent=1 // pred_check
      _
    $region19: #{tpu_custom_call.1} parent=1 // pred_check_branch
      %65 = sbr.rel (0) target = $region21
    $region20: #{tpu_custom_call.1} parent=1 // pred_region
      _
    $region21: #{tpu_custom_call.1} parent=1 // pred_fallthru
      _
    // Predicated region
    $region22: #{tpu_custom_call.1} parent=1 // pred_check
      _
    $region23: #{tpu_custom_call.1} parent=1 // pred_check_branch
      %67 = sbr.rel (0) target = $region25
    $region24: #{tpu_custom_call.1} parent=1 // pred_region
      %s69 = ssub.s32 6144, 6144
      %70 = vsyncadd [#allocation9], %s69
      %s71 = sshll.u32 [#allocation10], 4
      %s72 = int_to_ptr.vmem [resolvable:$true] %s71
      %77 = dma.hbm_to_vmem [thread:$0]  %s5, 6144, %s72, [#allocation9], 128, 128, 8
    $region25: #{tpu_custom_call.1} parent=1 // pred_fallthru
      _
    // Predicated region
    $region26: #{tpu_custom_call.1} parent=1 // pred_check
      _
    $region27: #{tpu_custom_call.1} parent=1 // pred_check_branch
      %79 = sbr.rel (0) target = $region29
    $region28: #{tpu_custom_call.1} parent=1 // pred_region
      _
    $region29: #{tpu_custom_call.1} parent=1 // pred_fallthru
      _
    // Predicated region
    $region30: #{tpu_custom_call.1} parent=1 // pred_check
      _
    $region31: #{tpu_custom_call.1} parent=1 // pred_check_branch
      %81 = sbr.rel (0) target = $region33
    $region32: #{tpu_custom_call.1} parent=1 // pred_region
      %82 = dma.done [#allocation3], 256
    $region33: #{tpu_custom_call.1} parent=1 // pred_fallthru
      _
    // Predicated region
    $region34: #{tpu_custom_call.1} parent=1 // pred_check
      _
    $region35: #{tpu_custom_call.1} parent=1 // pred_check_branch
      %84 = sbr.rel (0) target = $region37
    $region36: #{tpu_custom_call.1} parent=1 // pred_region
      %85 = dma.done [#allocation6], 128
    $region37: #{tpu_custom_call.1} parent=1 // pred_fallthru
      _
    // Predicated region
    $region38: #{tpu_custom_call.1} parent=1 // pred_check
      _
    $region39: #{tpu_custom_call.1} parent=1 // pred_check_branch
      %87 = sbr.rel (0) target = $region41
    $region40: #{tpu_custom_call.1} parent=1 // pred_region
      %88 = dma.done [#allocation6], 256
    $region41: #{tpu_custom_call.1} parent=1 // pred_fallthru
      _
    // Predicated region
    $region42: #{tpu_custom_call.1} parent=1 // pred_check
      _
    $region43: #{tpu_custom_call.1} parent=1 // pred_check_branch
      %90 = sbr.rel (0) target = $region45
    $region44: #{tpu_custom_call.1} parent=1 // pred_region
      %91 = dma.done [#allocation9], 3072
    $region45: #{tpu_custom_call.1} parent=1 // pred_fallthru
      _
    // Predicated region
    $region46: #{tpu_custom_call.1} parent=1 // pred_check
      _
    $region47: #{tpu_custom_call.1} parent=1 // pred_check_branch
      %93 = sbr.rel (0) target = $region49
    $region48: #{tpu_custom_call.1} parent=1 // pred_region
      %94 = dma.done [#allocation9], 6144
    $region49: #{tpu_custom_call.1} parent=1 // pred_fallthru
      _
    %v96 = vld [vmem:[#allocation2] sm:$0xf]
    %v97 = vld [vmem:[#allocation2 + $0x4] sm:$0xf]
    %v98 = vld [vmem:[#allocation2 + $0x8] sm:$0xf]
    %v99 = vld [vmem:[#allocation2 + $0xc] sm:$0xf]
    %v100 = vld [vmem:[#allocation7] sm:$0xf]
    %v101 = vld [vmem:[#allocation7 + $0x4] sm:$0xf]
    %v102 = vld [vmem:[#allocation7 + $0x8] sm:$0xf]
    %v103 = vld [vmem:[#allocation7 + $0xc] sm:$0xf]
    %v108 = vunpack.c.l.b16 %v96
    %v109 = vunpack.c.l.b16 %v97
    %v110 = vunpack.c.l.b16 %v98
    %v111 = vunpack.c.l.b16 %v99
    %v112 = vpack.c.b16 %v109, %v108
    %v113 = vpack.c.b16 %v111, %v110
    %v118 = vunpack.c.l.b16 %v100
    %v119 = vunpack.c.l.b16 %v101
    %v120 = vunpack.c.l.b16 %v102
    %v121 = vunpack.c.l.b16 %v103
    %v122 = vpack.c.b16 %v119, %v118
    %v123 = vpack.c.b16 %v121, %v120
    %vm126 = vcmask 261120
    %v128 = vsel %vm126, %v112, 0
    %v131 = vsel %vm126, %v113, 0
    %133 = vmatprep.subr.bf16.mxu0 0
    %134 = vmatpush1.bf16.msra.mxu0 %v122
    %135 = vmatprep.subr.bf16.mxu0 0
    %136 = vmatpush1.bf16.msra.mxu0 %v123
    %137 = vmatprep.subr.bf16.mxu0 0
    %138 = vmatpush1.bf16.msra.mxu0 0
    %139 = vmatprep.subr.bf16.mxu0 0
    %140 = vmatpush1.bf16.msra.mxu0 0
    %141 = vmatprep.subr.bf16.mxu0 0
    %142 = vmatpush1.bf16.msra.mxu0 0
    %143 = vmatprep.subr.bf16.mxu0 0
    %144 = vmatpush1.bf16.msra.mxu0 0
    %145 = vmatprep.subr.bf16.mxu0 0
    %146 = vmatpush1.bf16.msra.mxu0 0
    %147 = vmatprep.subr.bf16.mxu0 0
    %148 = vmatpush1.bf16.msra.mxu0 0
    %149 = vmatprep.subr.bf16.mxu0 0
    %150 = vmatpush1.bf16.msra.mxu0 0
    %151 = vmatprep.subr.bf16.mxu0 0
    %152 = vmatpush1.bf16.msra.mxu0 0
    %153 = vmatprep.subr.bf16.mxu0 0
    %154 = vmatpush1.bf16.msra.mxu0 0
    %155 = vmatprep.subr.bf16.mxu0 0
    %156 = vmatpush1.bf16.msra.mxu0 0
    %157 = vmatprep.subr.bf16.mxu0 0
    %158 = vmatpush1.bf16.msra.mxu0 0
    %159 = vmatprep.subr.bf16.mxu0 0
    %160 = vmatpush1.bf16.msra.mxu0 0
    %161 = vmatprep.subr.bf16.mxu0 0
    %162 = vmatpush1.bf16.msra.mxu0 0
    %163 = vmatprep.subr.bf16.mxu0 0
    %164 = vmatpush1.bf16.msra.mxu0 0
    %165 = vmatprep.mubr.bf16.mxu0 0
    %166 = vmatmul.mubr.bf16.gmra.mrb[0].mxu0 %v128
    %v167 = vpop.f32.mrb[0].mxu0
    %v168 = vadd.f32 0.0, %v167
    %v169 = vpop.f32.mrb[0].mxu0
    %v170 = vpop.f32.mrb[0].mxu0
    %v171 = vadd.f32 0.0, %v170
    %v172 = vpop.f32.mrb[0].mxu0
    %173 = vmatprep.mubr.bf16.mxu0 0
    %174 = vmatmul.mubr.bf16.gmra.mrb[0].mxu0 %v131
    %v175 = vpop.f32.mrb[0].mxu0
    %v176 = vadd.f32 0.0, %v175
    %v177 = vpop.f32.mrb[0].mxu0
    %v178 = vpop.f32.mrb[0].mxu0
    %v179 = vadd.f32 0.0, %v178
    %v180 = vpop.f32.mrb[0].mxu0
    %181 = vdwg.mxu0
    %v182 = vpack.c.bf16 %v171, %v168
    %v183 = vpack.c.bf16 %v179, %v176
    %v184 = vld [vmem:[#allocation8] sm:$0xf]
    %v185 = vld [vmem:[#allocation8 + $0x4] sm:$0xf]
    %v186 = vld [vmem:[#allocation8 + $0x8] sm:$0xf]
    %v187 = vld [vmem:[#allocation8 + $0xc] sm:$0xf]
    %v188 = vld [vmem:[#allocation8 + $0x10] sm:$0xf]
    %v189 = vld [vmem:[#allocation8 + $0x14] sm:$0xf]
    %v190 = vld [vmem:[#allocation8 + $0x18] sm:$0xf]
    %v191 = vld [vmem:[#allocation8 + $0x1c] sm:$0xf]
    %v192 = vld [vmem:[#allocation8 + $0x20] sm:$0xf]
    %v193 = vld [vmem:[#allocation8 + $0x24] sm:$0xf]
    %v194 = vld [vmem:[#allocation8 + $0x28] sm:$0xf]
    %v195 = vld [vmem:[#allocation8 + $0x2c] sm:$0xf]
    %v196 = vld [vmem:[#allocation8 + $0x30] sm:$0xf]
    %v197 = vld [vmem:[#allocation8 + $0x34] sm:$0xf]
    %v198 = vld [vmem:[#allocation8 + $0x38] sm:$0xf]
    %v199 = vld [vmem:[#allocation8 + $0x3c] sm:$0xf]
    %v200 = vld [vmem:[%s4] sm:$0x1]
    %v202 = vlaneseq
    %v203 = vshrl.u32 %v202, 7
    %v204 = vsub.s32 0, %v203
    %v205 = vrot.slane %v200, %v204
    %v223 = vunpack.c.l.b16 %v184
    %v224 = vunpack.c.l.b16 %v185
    %v225 = vunpack.c.l.b16 %v186
    %v226 = vunpack.c.l.b16 %v187
    %v227 = vunpack.c.l.b16 %v188
    %v228 = vunpack.c.l.b16 %v189
    %v229 = vunpack.c.l.b16 %v190
    %v230 = vunpack.c.l.b16 %v191
    %v231 = vunpack.c.l.b16 %v192
    %v232 = vunpack.c.l.b16 %v193
    %v233 = vunpack.c.l.b16 %v194
    %v234 = vunpack.c.l.b16 %v195
    %v235 = vunpack.c.l.b16 %v196
    %v236 = vunpack.c.l.b16 %v197
    %v237 = vunpack.c.l.b16 %v198
    %v238 = vunpack.c.l.b16 %v199
    %v239 = vpack.c.b16 %v224, %v223
    %v240 = vpack.c.b16 %v226, %v225
    %v241 = vpack.c.b16 %v228, %v227
    %v242 = vpack.c.b16 %v230, %v229
    %v243 = vpack.c.b16 %v232, %v231
    %v244 = vpack.c.b16 %v234, %v233
    %v245 = vpack.c.b16 %v236, %v235
    %v246 = vpack.c.b16 %v238, %v237
    %255 = vmatprep.subr.bf16.mxu0 0
    %256 = vmatpush1.bf16.msra.mxu0 %v239
    %257 = vmatprep.subr.bf16.mxu0 0
    %258 = vmatpush1.bf16.msra.mxu0 %v240
    %259 = vmatprep.subr.bf16.mxu0 0
    %260 = vmatpush1.bf16.msra.mxu0 %v241
    %261 = vmatprep.subr.bf16.mxu0 0
    %262 = vmatpush1.bf16.msra.mxu0 %v242
    %263 = vmatprep.subr.bf16.mxu0 0
    %264 = vmatpush1.bf16.msra.mxu0 %v243
    %265 = vmatprep.subr.bf16.mxu0 0
    %266 = vmatpush1.bf16.msra.mxu0 %v244
    %267 = vmatprep.subr.bf16.mxu0 0
    %268 = vmatpush1.bf16.msra.mxu0 %v245
    %269 = vmatprep.subr.bf16.mxu0 0
    %270 = vmatpush1.bf16.msra.mxu0 %v246
    %271 = vmatprep.subr.bf16.mxu0 0
    %272 = vmatpush1.bf16.msra.mxu0 0
    %273 = vmatprep.subr.bf16.mxu0 0
    %274 = vmatpush1.bf16.msra.mxu0 0
    %275 = vmatprep.subr.bf16.mxu0 0
    %276 = vmatpush1.bf16.msra.mxu0 0
    %277 = vmatprep.subr.bf16.mxu0 0
    %278 = vmatpush1.bf16.msra.mxu0 0
    %279 = vmatprep.subr.bf16.mxu0 0
    %280 = vmatpush1.bf16.msra.mxu0 0
    %281 = vmatprep.subr.bf16.mxu0 0
    %282 = vmatpush1.bf16.msra.mxu0 0
    %283 = vmatprep.subr.bf16.mxu0 0
    %284 = vmatpush1.bf16.msra.mxu0 0
    %285 = vmatprep.subr.bf16.mxu0 0
    %286 = vmatpush1.bf16.msra.mxu0 0
    %287 = vmatprep.mubr.bf16.mxu0 0
    %288 = vmatmul.mubr.bf16.gmra.mrb[0].mxu0 %v182
    %v289 = vpop.f32.mrb[0].mxu0
    %v290 = vadd.f32 %v205, %v289
    %v291 = vpop.f32.mrb[0].mxu0
    %v292 = vpop.f32.mrb[0].mxu0
    %v293 = vadd.f32 %v205, %v292
    %v294 = vpop.f32.mrb[0].mxu0
    %295 = vmatprep.mubr.bf16.mxu0 0
    %296 = vmatmul.mubr.bf16.gmra.mrb[0].mxu0 %v183
    %v297 = vpop.f32.mrb[0].mxu0
    %v298 = vadd.f32 %v205, %v297
    %v299 = vpop.f32.mrb[0].mxu0
    %v300 = vpop.f32.mrb[0].mxu0
    %v301 = vadd.f32 %v205, %v300
    %v302 = vpop.f32.mrb[0].mxu0
    %303 = vdwg.mxu0
    %v304 = vmax.f32 %v290, 0.0
    %v305 = vmax.f32 %v293, 0.0
    %v306 = vmax.f32 %v298, 0.0
    %v307 = vmax.f32 %v301, 0.0
    %v308 = vpack.c.bf16 %v305, %v304
    %v309 = vpack.c.bf16 %v307, %v306
    %v310 = vld [vmem:[#allocation10] sm:$0xff]
    %v311 = vld [vmem:[#allocation10 + $0x8] sm:$0xff]
    %v312 = vld [vmem:[#allocation10 + $0x10] sm:$0xff]
    %v313 = vld [vmem:[#allocation10 + $0x18] sm:$0xff]
    %v314 = vld [vmem:[#allocation10 + $0x20] sm:$0xff]
    %v315 = vld [vmem:[#allocation10 + $0x28] sm:$0xff]
    %v316 = vld [vmem:[#allocation10 + $0x30] sm:$0xff]
    %v317 = vld [vmem:[#allocation10 + $0x38] sm:$0xff]
    %v318 = vld [vmem:[#allocation10 + $0x40] sm:$0xff]
    %v319 = vld [vmem:[#allocation10 + $0x48] sm:$0xff]
    %v320 = vld [vmem:[#allocation10 + $0x50] sm:$0xff]
    %v321 = vld [vmem:[#allocation10 + $0x58] sm:$0xff]
    %v322 = vld [vmem:[#allocation10 + $0x60] sm:$0xff]
    %v323 = vld [vmem:[#allocation10 + $0x68] sm:$0xff]
    %v324 = vld [vmem:[#allocation10 + $0x70] sm:$0xff]
    %v325 = vld [vmem:[#allocation10 + $0x78] sm:$0xff]
    %v342 = vunpack.c.l.b16 %v310
    %v343 = vunpack.c.h.b16 %v310
    %v344 = vunpack.c.l.b16 %v311
    %v345 = vunpack.c.h.b16 %v311
    %v346 = vunpack.c.l.b16 %v312
    %v347 = vunpack.c.h.b16 %v312
    %v348 = vunpack.c.l.b16 %v313
    %v349 = vunpack.c.h.b16 %v313
    %v350 = vunpack.c.l.b16 %v314
    %v351 = vunpack.c.h.b16 %v314
    %v352 = vunpack.c.l.b16 %v315
    %v353 = vunpack.c.h.b16 %v315
    %v354 = vunpack.c.l.b16 %v316
    %v355 = vunpack.c.h.b16 %v316
    %v356 = vunpack.c.l.b16 %v317
    %v357 = vunpack.c.h.b16 %v317
    %v358 = vunpack.c.l.b16 %v318
    %v359 = vunpack.c.h.b16 %v318
    %v360 = vunpack.c.l.b16 %v319
    %v361 = vunpack.c.h.b16 %v319
    %v362 = vunpack.c.l.b16 %v320
    %v363 = vunpack.c.h.b16 %v320
    %v364 = vunpack.c.l.b16 %v321
    %v365 = vunpack.c.h.b16 %v321
    %v366 = vunpack.c.l.b16 %v322
    %v367 = vunpack.c.h.b16 %v322
    %v368 = vunpack.c.l.b16 %v323
    %v369 = vunpack.c.h.b16 %v323
    %v370 = vunpack.c.l.b16 %v324
    %v371 = vunpack.c.h.b16 %v324
    %v372 = vunpack.c.l.b16 %v325
    %v373 = vunpack.c.h.b16 %v325
    %v374 = vpack.c.b16 %v344, %v342
    %v375 = vpack.c.b16 %v345, %v343
    %v376 = vpack.c.b16 %v348, %v346
    %v377 = vpack.c.b16 %v349, %v347
    %v378 = vpack.c.b16 %v352, %v350
    %v379 = vpack.c.b16 %v353, %v351
    %v380 = vpack.c.b16 %v356, %v354
    %v381 = vpack.c.b16 %v357, %v355
    %v382 = vpack.c.b16 %v360, %v358
    %v383 = vpack.c.b16 %v361, %v359
    %v384 = vpack.c.b16 %v364, %v362
    %v385 = vpack.c.b16 %v365, %v363
    %v386 = vpack.c.b16 %v368, %v366
    %v387 = vpack.c.b16 %v369, %v367
    %v388 = vpack.c.b16 %v372, %v370
    %v389 = vpack.c.b16 %v373, %v371
    %406 = vmatprep.subr.bf16.mxu0 %v375
    %407 = vmatpush1.bf16.msra.mxu0 %v374
    %408 = vmatprep.subr.bf16.mxu0 %v377
    %409 = vmatpush1.bf16.msra.mxu0 %v376
    %410 = vmatprep.subr.bf16.mxu0 %v379
    %411 = vmatpush1.bf16.msra.mxu0 %v378
    %412 = vmatprep.subr.bf16.mxu0 %v381
    %413 = vmatpush1.bf16.msra.mxu0 %v380
    %414 = vmatprep.subr.bf16.mxu0 %v383
    %415 = vmatpush1.bf16.msra.mxu0 %v382
    %416 = vmatprep.subr.bf16.mxu0 %v385
    %417 = vmatpush1.bf16.msra.mxu0 %v384
    %418 = vmatprep.subr.bf16.mxu0 %v387
    %419 = vmatpush1.bf16.msra.mxu0 %v386
    %420 = vmatprep.subr.bf16.mxu0 %v389
    %421 = vmatpush1.bf16.msra.mxu0 %v388
    %422 = vmatprep.subr.bf16.mxu0 0
    %423 = vmatpush1.bf16.msra.mxu0 0
    %424 = vmatprep.subr.bf16.mxu0 0
    %425 = vmatpush1.bf16.msra.mxu0 0
    %426 = vmatprep.subr.bf16.mxu0 0
    %427 = vmatpush1.bf16.msra.mxu0 0
    %428 = vmatprep.subr.bf16.mxu0 0
    %429 = vmatpush1.bf16.msra.mxu0 0
    %430 = vmatprep.subr.bf16.mxu0 0
    %431 = vmatpush1.bf16.msra.mxu0 0
    %432 = vmatprep.subr.bf16.mxu0 0
    %433 = vmatpush1.bf16.msra.mxu0 0
    %434 = vmatprep.subr.bf16.mxu0 0
    %435 = vmatpush1.bf16.msra.mxu0 0
    %436 = vmatprep.subr.bf16.mxu0 0
    %437 = vmatpush1.bf16.msra.mxu0 0
    %438 = vmatprep.mubr.bf16.mxu0 0
    %439 = vmatmul.mubr.bf16.gmra.mrb[0].mxu0 %v308
    %v440 = vpop.f32.mrb[0].mxu0
    %v441 = vadd.f32 0.0, %v440
    %v442 = vpop.f32.mrb[0].mxu0
    %v443 = vadd.f32 0.0, %v442
    %v444 = vpop.f32.mrb[0].mxu0
    %v445 = vadd.f32 0.0, %v444
    %v446 = vpop.f32.mrb[0].mxu0
    %v447 = vadd.f32 0.0, %v446
    %448 = vmatprep.mubr.bf16.mxu0 0
    %449 = vmatmul.mubr.bf16.gmra.mrb[0].mxu0 %v309
    %v450 = vpop.f32.mrb[0].mxu0
    %v451 = vadd.f32 0.0, %v450
    %v452 = vpop.f32.mrb[0].mxu0
    %v453 = vadd.f32 0.0, %v452
    %v454 = vpop.f32.mrb[0].mxu0
    %v455 = vadd.f32 0.0, %v454
    %v456 = vpop.f32.mrb[0].mxu0
    %v457 = vadd.f32 0.0, %v456
    %458 = vdwg.mxu0
    %v459 = vld [vmem:[%s6] sm:$0x1]
    %v461 = vlaneseq
    %v462 = vshrl.u32 %v461, 7
    %v463 = vsub.s32 0, %v462
    %v464 = vrot.slane %v459, %v463
    %v466 = vadd.f32 %v441, %v464
    %v467 = vadd.f32 %v445, %v464
    %v468 = vadd.f32 %v451, %v464
    %v469 = vadd.f32 %v455, %v464
    %v470 = vpack.c.bf16 %v467, %v466
    %v471 = vpack.c.bf16 %v469, %v468
    %472 = vmatprep.subr.bf16.mxu0 0
    %473 = vmatpush1.bf16.msra.mxu0 %v470
    %474 = vmatprep.subr.bf16.mxu0 0
    %475 = vmatpush1.bf16.msra.mxu0 %v471
    %476 = vmatprep.subr.bf16.mxu0 0
    %477 = vmatpush1.bf16.msra.mxu0 0
    %478 = vmatprep.subr.bf16.mxu0 0
    %479 = vmatpush1.bf16.msra.mxu0 0
    %480 = vmatprep.subr.bf16.mxu0 0
    %481 = vmatpush1.bf16.msra.mxu0 0
    %482 = vmatprep.subr.bf16.mxu0 0
    %483 = vmatpush1.bf16.msra.mxu0 0
    %484 = vmatprep.subr.bf16.mxu0 0
    %485 = vmatpush1.bf16.msra.mxu0 0
    %486 = vmatprep.subr.bf16.mxu0 0
    %487 = vmatpush1.bf16.msra.mxu0 0
    %488 = vmatprep.subr.bf16.mxu0 0
    %489 = vmatpush1.bf16.msra.mxu0 0
    %490 = vmatprep.subr.bf16.mxu0 0
    %491 = vmatpush1.bf16.msra.mxu0 0
    %492 = vmatprep.subr.bf16.mxu0 0
    %493 = vmatpush1.bf16.msra.mxu0 0
    %494 = vmatprep.subr.bf16.mxu0 0
    %495 = vmatpush1.bf16.msra.mxu0 0
    %496 = vmatprep.subr.bf16.mxu0 0
    %497 = vmatpush1.bf16.msra.mxu0 0
    %498 = vmatprep.subr.bf16.mxu0 0
    %499 = vmatpush1.bf16.msra.mxu0 0
    %500 = vmatprep.subr.bf16.mxu0 0
    %501 = vmatpush1.bf16.msra.mxu0 0
    %502 = vmatprep.subr.bf16.mxu0 0
    %503 = vmatpush1.bf16.msra.mxu0 0
    %504 = vmatprep.mubr.bf16.mxu0 0
    %505 = vmatmul.mubr.bf16.gmra.mrb[0].mxu0 %v128
    %v506 = vpop.f32.mrb[0].mxu0
    %v507 = vadd.f32 0.0, %v506
    %v508 = vpop.f32.mrb[0].mxu0
    %v509 = vpop.f32.mrb[0].mxu0
    %v510 = vadd.f32 0.0, %v509
    %v511 = vpop.f32.mrb[0].mxu0
    %512 = vmatprep.mubr.bf16.mxu0 0
    %513 = vmatmul.mubr.bf16.gmra.mrb[0].mxu0 %v131
    %v514 = vpop.f32.mrb[0].mxu0
    %v515 = vadd.f32 0.0, %v514
    %v516 = vpop.f32.mrb[0].mxu0
    %v517 = vpop.f32.mrb[0].mxu0
    %v518 = vadd.f32 0.0, %v517
    %v519 = vpop.f32.mrb[0].mxu0
    %520 = vdwg.mxu0
    %v521 = vpack.c.bf16 %v510, %v507
    %v522 = vpack.c.bf16 %v518, %v515
    %s523 = scalar_lea.vmem [#allocation8], 64
    %v524 = vld [vmem:[%s523] sm:$0xf]
    %v525 = vld [vmem:[%s523 + $0x4] sm:$0xf]
    %v526 = vld [vmem:[%s523 + $0x8] sm:$0xf]
    %v527 = vld [vmem:[%s523 + $0xc] sm:$0xf]
    %v528 = vld [vmem:[%s523 + $0x10] sm:$0xf]
    %v529 = vld [vmem:[%s523 + $0x14] sm:$0xf]
    %v530 = vld [vmem:[%s523 + $0x18] sm:$0xf]
    %v531 = vld [vmem:[%s523 + $0x1c] sm:$0xf]
    %v532 = vld [vmem:[%s523 + $0x20] sm:$0xf]
    %v533 = vld [vmem:[%s523 + $0x24] sm:$0xf]
    %v534 = vld [vmem:[%s523 + $0x28] sm:$0xf]
    %v535 = vld [vmem:[%s523 + $0x2c] sm:$0xf]
    %v536 = vld [vmem:[%s523 + $0x30] sm:$0xf]
    %v537 = vld [vmem:[%s523 + $0x34] sm:$0xf]
    %v538 = vld [vmem:[%s523 + $0x38] sm:$0xf]
    %v539 = vld [vmem:[%s523 + $0x3c] sm:$0xf]
    %s540 = scalar_lea.vmem %s4, 1
    %v541 = vld [vmem:[%s540] sm:$0x1]
    %v543 = vlaneseq
    %v544 = vshrl.u32 %v543, 7
    %v545 = vsub.s32 0, %v544
    %v546 = vrot.slane %v541, %v545
    %v564 = vunpack.c.l.b16 %v524
    %v565 = vunpack.c.l.b16 %v525
    %v566 = vunpack.c.l.b16 %v526
    %v567 = vunpack.c.l.b16 %v527
    %v568 = vunpack.c.l.b16 %v528
    %v569 = vunpack.c.l.b16 %v529
    %v570 = vunpack.c.l.b16 %v530
    %v571 = vunpack.c.l.b16 %v531
    %v572 = vunpack.c.l.b16 %v532
    %v573 = vunpack.c.l.b16 %v533
    %v574 = vunpack.c.l.b16 %v534
    %v575 = vunpack.c.l.b16 %v535
    %v576 = vunpack.c.l.b16 %v536
    %v577 = vunpack.c.l.b16 %v537
    %v578 = vunpack.c.l.b16 %v538
    %v579 = vunpack.c.l.b16 %v539
    %v580 = vpack.c.b16 %v565, %v564
    %v581 = vpack.c.b16 %v567, %v566
    %v582 = vpack.c.b16 %v569, %v568
    %v583 = vpack.c.b16 %v571, %v570
    %v584 = vpack.c.b16 %v573, %v572
    %v585 = vpack.c.b16 %v575, %v574
    %v586 = vpack.c.b16 %v577, %v576
    %v587 = vpack.c.b16 %v579, %v578
    %596 = vmatprep.subr.bf16.mxu0 0
    %597 = vmatpush1.bf16.msra.mxu0 %v580
    %598 = vmatprep.subr.bf16.mxu0 0
    %599 = vmatpush1.bf16.msra.mxu0 %v581
    %600 = vmatprep.subr.bf16.mxu0 0
    %601 = vmatpush1.bf16.msra.mxu0 %v582
    %602 = vmatprep.subr.bf16.mxu0 0
    %603 = vmatpush1.bf16.msra.mxu0 %v583
    %604 = vmatprep.subr.bf16.mxu0 0
    %605 = vmatpush1.bf16.msra.mxu0 %v584
    %606 = vmatprep.subr.bf16.mxu0 0
    %607 = vmatpush1.bf16.msra.mxu0 %v585
    %608 = vmatprep.subr.bf16.mxu0 0
    %609 = vmatpush1.bf16.msra.mxu0 %v586
    %610 = vmatprep.subr.bf16.mxu0 0
    %611 = vmatpush1.bf16.msra.mxu0 %v587
    %612 = vmatprep.subr.bf16.mxu0 0
    %613 = vmatpush1.bf16.msra.mxu0 0
    %614 = vmatprep.subr.bf16.mxu0 0
    %615 = vmatpush1.bf16.msra.mxu0 0
    %616 = vmatprep.subr.bf16.mxu0 0
    %617 = vmatpush1.bf16.msra.mxu0 0
    %618 = vmatprep.subr.bf16.mxu0 0
    %619 = vmatpush1.bf16.msra.mxu0 0
    %620 = vmatprep.subr.bf16.mxu0 0
    %621 = vmatpush1.bf16.msra.mxu0 0
    %622 = vmatprep.subr.bf16.mxu0 0
    %623 = vmatpush1.bf16.msra.mxu0 0
    %624 = vmatprep.subr.bf16.mxu0 0
    %625 = vmatpush1.bf16.msra.mxu0 0
    %626 = vmatprep.subr.bf16.mxu0 0
    %627 = vmatpush1.bf16.msra.mxu0 0
    %628 = vmatprep.mubr.bf16.mxu0 0
    %629 = vmatmul.mubr.bf16.gmra.mrb[0].mxu0 %v521
    %v630 = vpop.f32.mrb[0].mxu0
    %v631 = vadd.f32 %v546, %v630
    %v632 = vpop.f32.mrb[0].mxu0
    %v633 = vpop.f32.mrb[0].mxu0
    %v634 = vadd.f32 %v546, %v633
    %v635 = vpop.f32.mrb[0].mxu0
    %636 = vmatprep.mubr.bf16.mxu0 0
    %637 = vmatmul.mubr.bf16.gmra.mrb[0].mxu0 %v522
    %v638 = vpop.f32.mrb[0].mxu0
    %v639 = vadd.f32 %v546, %v638
    %v640 = vpop.f32.mrb[0].mxu0
    %v641 = vpop.f32.mrb[0].mxu0
    %v642 = vadd.f32 %v546, %v641
    %v643 = vpop.f32.mrb[0].mxu0
    %644 = vdwg.mxu0
    %v645 = vmax.f32 %v631, 0.0
    %v646 = vmax.f32 %v634, 0.0
    %v647 = vmax.f32 %v639, 0.0
    %v648 = vmax.f32 %v642, 0.0
    %v649 = vpack.c.bf16 %v646, %v645
    %v650 = vpack.c.bf16 %v648, %v647
    %s651 = scalar_lea.vmem [#allocation10], 128
    %v652 = vld [vmem:[%s651] sm:$0xff]
    %v653 = vld [vmem:[%s651 + $0x8] sm:$0xff]
    %v654 = vld [vmem:[%s651 + $0x10] sm:$0xff]
    %v655 = vld [vmem:[%s651 + $0x18] sm:$0xff]
    %v656 = vld [vmem:[%s651 + $0x20] sm:$0xff]
    %v657 = vld [vmem:[%s651 + $0x28] sm:$0xff]
    %v658 = vld [vmem:[%s651 + $0x30] sm:$0xff]
    %v659 = vld [vmem:[%s651 + $0x38] sm:$0xff]
    %v660 = vld [vmem:[%s651 + $0x40] sm:$0xff]
    %v661 = vld [vmem:[%s651 + $0x48] sm:$0xff]
    %v662 = vld [vmem:[%s651 + $0x50] sm:$0xff]
    %v663 = vld [vmem:[%s651 + $0x58] sm:$0xff]
    %v664 = vld [vmem:[%s651 + $0x60] sm:$0xff]
    %v665 = vld [vmem:[%s651 + $0x68] sm:$0xff]
    %v666 = vld [vmem:[%s651 + $0x70] sm:$0xff]
    %v667 = vld [vmem:[%s651 + $0x78] sm:$0xff]
    %v684 = vunpack.c.l.b16 %v652
    %v685 = vunpack.c.h.b16 %v652
    %v686 = vunpack.c.l.b16 %v653
    %v687 = vunpack.c.h.b16 %v653
    %v688 = vunpack.c.l.b16 %v654
    %v689 = vunpack.c.h.b16 %v654
    %v690 = vunpack.c.l.b16 %v655
    %v691 = vunpack.c.h.b16 %v655
    %v692 = vunpack.c.l.b16 %v656
    %v693 = vunpack.c.h.b16 %v656
    %v694 = vunpack.c.l.b16 %v657
    %v695 = vunpack.c.h.b16 %v657
    %v696 = vunpack.c.l.b16 %v658
    %v697 = vunpack.c.h.b16 %v658
    %v698 = vunpack.c.l.b16 %v659
    %v699 = vunpack.c.h.b16 %v659
    %v700 = vunpack.c.l.b16 %v660
    %v701 = vunpack.c.h.b16 %v660
    %v702 = vunpack.c.l.b16 %v661
    %v703 = vunpack.c.h.b16 %v661
    %v704 = vunpack.c.l.b16 %v662
    %v705 = vunpack.c.h.b16 %v662
    %v706 = vunpack.c.l.b16 %v663
    %v707 = vunpack.c.h.b16 %v663
    %v708 = vunpack.c.l.b16 %v664
    %v709 = vunpack.c.h.b16 %v664
    %v710 = vunpack.c.l.b16 %v665
    %v711 = vunpack.c.h.b16 %v665
    %v712 = vunpack.c.l.b16 %v666
    %v713 = vunpack.c.h.b16 %v666
    %v714 = vunpack.c.l.b16 %v667
    %v715 = vunpack.c.h.b16 %v667
    %v716 = vpack.c.b16 %v686, %v684
    %v717 = vpack.c.b16 %v687, %v685
    %v718 = vpack.c.b16 %v690, %v688
    %v719 = vpack.c.b16 %v691, %v689
    %v720 = vpack.c.b16 %v694, %v692
    %v721 = vpack.c.b16 %v695, %v693
    %v722 = vpack.c.b16 %v698, %v696
    %v723 = vpack.c.b16 %v699, %v697
    %v724 = vpack.c.b16 %v702, %v700
    %v725 = vpack.c.b16 %v703, %v701
    %v726 = vpack.c.b16 %v706, %v704
    %v727 = vpack.c.b16 %v707, %v705
    %v728 = vpack.c.b16 %v710, %v708
    %v729 = vpack.c.b16 %v711, %v709
    %v730 = vpack.c.b16 %v714, %v712
    %v731 = vpack.c.b16 %v715, %v713
    %748 = vmatprep.subr.bf16.mxu0 %v717
    %749 = vmatpush1.bf16.msra.mxu0 %v716
    %750 = vmatprep.subr.bf16.mxu0 %v719
    %751 = vmatpush1.bf16.msra.mxu0 %v718
    %752 = vmatprep.subr.bf16.mxu0 %v721
    %753 = vmatpush1.bf16.msra.mxu0 %v720
    %754 = vmatprep.subr.bf16.mxu0 %v723
    %755 = vmatpush1.bf16.msra.mxu0 %v722
    %756 = vmatprep.subr.bf16.mxu0 %v725
    %757 = vmatpush1.bf16.msra.mxu0 %v724
    %758 = vmatprep.subr.bf16.mxu0 %v727
    %759 = vmatpush1.bf16.msra.mxu0 %v726
    %760 = vmatprep.subr.bf16.mxu0 %v729
    %761 = vmatpush1.bf16.msra.mxu0 %v728
    %762 = vmatprep.subr.bf16.mxu0 %v731
    %763 = vmatpush1.bf16.msra.mxu0 %v730
    %764 = vmatprep.subr.bf16.mxu0 0
    %765 = vmatpush1.bf16.msra.mxu0 0
    %766 = vmatprep.subr.bf16.mxu0 0
    %767 = vmatpush1.bf16.msra.mxu0 0
    %768 = vmatprep.subr.bf16.mxu0 0
    %769 = vmatpush1.bf16.msra.mxu0 0
    %770 = vmatprep.subr.bf16.mxu0 0
    %771 = vmatpush1.bf16.msra.mxu0 0
    %772 = vmatprep.subr.bf16.mxu0 0
    %773 = vmatpush1.bf16.msra.mxu0 0
    %774 = vmatprep.subr.bf16.mxu0 0
    %775 = vmatpush1.bf16.msra.mxu0 0
    %776 = vmatprep.subr.bf16.mxu0 0
    %777 = vmatpush1.bf16.msra.mxu0 0
    %778 = vmatprep.subr.bf16.mxu0 0
    %779 = vmatpush1.bf16.msra.mxu0 0
    %780 = vmatprep.mubr.bf16.mxu0 0
    %781 = vmatmul.mubr.bf16.gmra.mrb[0].mxu0 %v649
    %v782 = vpop.f32.mrb[0].mxu0
    %v783 = vadd.f32 0.0, %v782
    %v784 = vpop.f32.mrb[0].mxu0
    %v785 = vadd.f32 0.0, %v784
    %v786 = vpop.f32.mrb[0].mxu0
    %v787 = vadd.f32 0.0, %v786
    %v788 = vpop.f32.mrb[0].mxu0
    %v789 = vadd.f32 0.0, %v788
    %790 = vmatprep.mubr.bf16.mxu0 0
    %791 = vmatmul.mubr.bf16.gmra.mrb[0].mxu0 %v650
    %v792 = vpop.f32.mrb[0].mxu0
    %v793 = vadd.f32 0.0, %v792
    %v794 = vpop.f32.mrb[0].mxu0
    %v795 = vadd.f32 0.0, %v794
    %v796 = vpop.f32.mrb[0].mxu0
    %v797 = vadd.f32 0.0, %v796
    %v798 = vpop.f32.mrb[0].mxu0
    %v799 = vadd.f32 0.0, %v798
    %800 = vdwg.mxu0
    %s801 = scalar_lea.vmem %s6, 1
    %v802 = vld [vmem:[%s801] sm:$0x1]
    %v804 = vlaneseq
    %v805 = vshrl.u32 %v804, 7
    %v806 = vsub.s32 0, %v805
    %v807 = vrot.slane %v802, %v806
    %v809 = vadd.f32 %v783, %v807
    %v810 = vadd.f32 %v787, %v807
    %v811 = vadd.f32 %v793, %v807
    %v812 = vadd.f32 %v797, %v807
    %v813 = vpack.c.bf16 %v810, %v809
    %v814 = vpack.c.bf16 %v812, %v811
    %v815 = vadd.f32 %v443, %v785
    %v816 = vadd.f32 %v447, %v789
    %v817 = vadd.f32 %v453, %v795
    %v818 = vadd.f32 %v457, %v799
    %819 = vmatprep.subr.bf16.mxu0 0
    %820 = vmatpush1.bf16.msra.mxu0 %v813
    %821 = vmatprep.subr.bf16.mxu0 0
    %822 = vmatpush1.bf16.msra.mxu0 %v814
    %823 = vmatprep.subr.bf16.mxu0 0
    %824 = vmatpush1.bf16.msra.mxu0 0
    %825 = vmatprep.subr.bf16.mxu0 0
    %826 = vmatpush1.bf16.msra.mxu0 0
    %827 = vmatprep.subr.bf16.mxu0 0
    %828 = vmatpush1.bf16.msra.mxu0 0
    %829 = vmatprep.subr.bf16.mxu0 0
    %830 = vmatpush1.bf16.msra.mxu0 0
    %831 = vmatprep.subr.bf16.mxu0 0
    %832 = vmatpush1.bf16.msra.mxu0 0
    %833 = vmatprep.subr.bf16.mxu0 0
    %834 = vmatpush1.bf16.msra.mxu0 0
    %835 = vmatprep.subr.bf16.mxu0 0
    %836 = vmatpush1.bf16.msra.mxu0 0
    %837 = vmatprep.subr.bf16.mxu0 0
    %838 = vmatpush1.bf16.msra.mxu0 0
    %839 = vmatprep.subr.bf16.mxu0 0
    %840 = vmatpush1.bf16.msra.mxu0 0
    %841 = vmatprep.subr.bf16.mxu0 0
    %842 = vmatpush1.bf16.msra.mxu0 0
    %843 = vmatprep.subr.bf16.mxu0 0
    %844 = vmatpush1.bf16.msra.mxu0 0
    %845 = vmatprep.subr.bf16.mxu0 0
    %846 = vmatpush1.bf16.msra.mxu0 0
    %847 = vmatprep.subr.bf16.mxu0 0
    %848 = vmatpush1.bf16.msra.mxu0 0
    %849 = vmatprep.subr.bf16.mxu0 0
    %850 = vmatpush1.bf16.msra.mxu0 0
    %851 = vmatprep.mubr.bf16.mxu0 0
    %852 = vmatmul.mubr.bf16.gmra.mrb[0].mxu0 %v128
    %v853 = vpop.f32.mrb[0].mxu0
    %v854 = vadd.f32 0.0, %v853
    %v855 = vpop.f32.mrb[0].mxu0
    %v856 = vpop.f32.mrb[0].mxu0
    %v857 = vadd.f32 0.0, %v856
    %v858 = vpop.f32.mrb[0].mxu0
    %859 = vmatprep.mubr.bf16.mxu0 0
    %860 = vmatmul.mubr.bf16.gmra.mrb[0].mxu0 %v131
    %v861 = vpop.f32.mrb[0].mxu0
    %v862 = vadd.f32 0.0, %v861
    %v863 = vpop.f32.mrb[0].mxu0
    %v864 = vpop.f32.mrb[0].mxu0
    %v865 = vadd.f32 0.0, %v864
    %v866 = vpop.f32.mrb[0].mxu0
    %867 = vdwg.mxu0
    %v868 = vpack.c.bf16 %v857, %v854
    %v869 = vpack.c.bf16 %v865, %v862
    %s870 = scalar_lea.vmem [#allocation8], 128
    %v871 = vld [vmem:[%s870] sm:$0xf]
    %v872 = vld [vmem:[%s870 + $0x4] sm:$0xf]
    %v873 = vld [vmem:[%s870 + $0x8] sm:$0xf]
    %v874 = vld [vmem:[%s870 + $0xc] sm:$0xf]
    %v875 = vld [vmem:[%s870 + $0x10] sm:$0xf]
    %v876 = vld [vmem:[%s870 + $0x14] sm:$0xf]
    %v877 = vld [vmem:[%s870 + $0x18] sm:$0xf]
    %v878 = vld [vmem:[%s870 + $0x1c] sm:$0xf]
    %v879 = vld [vmem:[%s870 + $0x20] sm:$0xf]
    %v880 = vld [vmem:[%s870 + $0x24] sm:$0xf]
    %v881 = vld [vmem:[%s870 + $0x28] sm:$0xf]
    %v882 = vld [vmem:[%s870 + $0x2c] sm:$0xf]
    %v883 = vld [vmem:[%s870 + $0x30] sm:$0xf]
    %v884 = vld [vmem:[%s870 + $0x34] sm:$0xf]
    %v885 = vld [vmem:[%s870 + $0x38] sm:$0xf]
    %v886 = vld [vmem:[%s870 + $0x3c] sm:$0xf]
    %s887 = scalar_lea.vmem %s4, 2
    %v888 = vld [vmem:[%s887] sm:$0x1]
    %v890 = vlaneseq
    %v891 = vshrl.u32 %v890, 7
    %v892 = vsub.s32 0, %v891
    %v893 = vrot.slane %v888, %v892
    %v911 = vunpack.c.l.b16 %v871
    %v912 = vunpack.c.l.b16 %v872
    %v913 = vunpack.c.l.b16 %v873
    %v914 = vunpack.c.l.b16 %v874
    %v915 = vunpack.c.l.b16 %v875
    %v916 = vunpack.c.l.b16 %v876
    %v917 = vunpack.c.l.b16 %v877
    %v918 = vunpack.c.l.b16 %v878
    %v919 = vunpack.c.l.b16 %v879
    %v920 = vunpack.c.l.b16 %v880
    %v921 = vunpack.c.l.b16 %v881
    %v922 = vunpack.c.l.b16 %v882
    %v923 = vunpack.c.l.b16 %v883
    %v924 = vunpack.c.l.b16 %v884
    %v925 = vunpack.c.l.b16 %v885
    %v926 = vunpack.c.l.b16 %v886
    %v927 = vpack.c.b16 %v912, %v911
    %v928 = vpack.c.b16 %v914, %v913
    %v929 = vpack.c.b16 %v916, %v915
    %v930 = vpack.c.b16 %v918, %v917
    %v931 = vpack.c.b16 %v920, %v919
    %v932 = vpack.c.b16 %v922, %v921
    %v933 = vpack.c.b16 %v924, %v923
    %v934 = vpack.c.b16 %v926, %v925
    %943 = vmatprep.subr.bf16.mxu0 0
    %944 = vmatpush1.bf16.msra.mxu0 %v927
    %945 = vmatprep.subr.bf16.mxu0 0
    %946 = vmatpush1.bf16.msra.mxu0 %v928
    %947 = vmatprep.subr.bf16.mxu0 0
    %948 = vmatpush1.bf16.msra.mxu0 %v929
    %949 = vmatprep.subr.bf16.mxu0 0
    %950 = vmatpush1.bf16.msra.mxu0 %v930
    %951 = vmatprep.subr.bf16.mxu0 0
    %952 = vmatpush1.bf16.msra.mxu0 %v931
    %953 = vmatprep.subr.bf16.mxu0 0
    %954 = vmatpush1.bf16.msra.mxu0 %v932
    %955 = vmatprep.subr.bf16.mxu0 0
    %956 = vmatpush1.bf16.msra.mxu0 %v933
    %957 = vmatprep.subr.bf16.mxu0 0
    %958 = vmatpush1.bf16.msra.mxu0 %v934
    %959 = vmatprep.subr.bf16.mxu0 0
    %960 = vmatpush1.bf16.msra.mxu0 0
    %961 = vmatprep.subr.bf16.mxu0 0
    %962 = vmatpush1.bf16.msra.mxu0 0
    %963 = vmatprep.subr.bf16.mxu0 0
    %964 = vmatpush1.bf16.msra.mxu0 0
    %965 = vmatprep.subr.bf16.mxu0 0
    %966 = vmatpush1.bf16.msra.mxu0 0
    %967 = vmatprep.subr.bf16.mxu0 0
    %968 = vmatpush1.bf16.msra.mxu0 0
    %969 = vmatprep.subr.bf16.mxu0 0
    %970 = vmatpush1.bf16.msra.mxu0 0
    %971 = vmatprep.subr.bf16.mxu0 0
    %972 = vmatpush1.bf16.msra.mxu0 0
    %973 = vmatprep.subr.bf16.mxu0 0
    %974 = vmatpush1.bf16.msra.mxu0 0
    %975 = vmatprep.mubr.bf16.mxu0 0
    %976 = vmatmul.mubr.bf16.gmra.mrb[0].mxu0 %v868
    %v977 = vpop.f32.mrb[0].mxu0
    %v978 = vadd.f32 %v893, %v977
    %v979 = vpop.f32.mrb[0].mxu0
    %v980 = vpop.f32.mrb[0].mxu0
    %v981 = vadd.f32 %v893, %v980
    %v982 = vpop.f32.mrb[0].mxu0
    %983 = vmatprep.mubr.bf16.mxu0 0
    %984 = vmatmul.mubr.bf16.gmra.mrb[0].mxu0 %v869
    %v985 = vpop.f32.mrb[0].mxu0
    %v986 = vadd.f32 %v893, %v985
    %v987 = vpop.f32.mrb[0].mxu0
    %v988 = vpop.f32.mrb[0].mxu0
    %v989 = vadd.f32 %v893, %v988
    %v990 = vpop.f32.mrb[0].mxu0
    %991 = vdwg.mxu0
    %v992 = vmax.f32 %v978, 0.0
    %v993 = vmax.f32 %v981, 0.0
    %v994 = vmax.f32 %v986, 0.0
    %v995 = vmax.f32 %v989, 0.0
    %v996 = vpack.c.bf16 %v993, %v992
    %v997 = vpack.c.bf16 %v995, %v994
    %s998 = scalar_lea.vmem [#allocation10], 256
    %v999 = vld [vmem:[%s998] sm:$0xff]
    %v1000 = vld [vmem:[%s998 + $0x8] sm:$0xff]
    %v1001 = vld [vmem:[%s998 + $0x10] sm:$0xff]
    %v1002 = vld [vmem:[%s998 + $0x18] sm:$0xff]
    %v1003 = vld [vmem:[%s998 + $0x20] sm:$0xff]
    %v1004 = vld [vmem:[%s998 + $0x28] sm:$0xff]
    %v1005 = vld [vmem:[%s998 + $0x30] sm:$0xff]
    %v1006 = vld [vmem:[%s998 + $0x38] sm:$0xff]
    %v1007 = vld [vmem:[%s998 + $0x40] sm:$0xff]
    %v1008 = vld [vmem:[%s998 + $0x48] sm:$0xff]
    %v1009 = vld [vmem:[%s998 + $0x50] sm:$0xff]
    %v1010 = vld [vmem:[%s998 + $0x58] sm:$0xff]
    %v1011 = vld [vmem:[%s998 + $0x60] sm:$0xff]
    %v1012 = vld [vmem:[%s998 + $0x68] sm:$0xff]
    %v1013 = vld [vmem:[%s998 + $0x70] sm:$0xff]
    %v1014 = vld [vmem:[%s998 + $0x78] sm:$0xff]
    %v1031 = vunpack.c.l.b16 %v999
    %v1032 = vunpack.c.h.b16 %v999
    %v1033 = vunpack.c.l.b16 %v1000
    %v1034 = vunpack.c.h.b16 %v1000
    %v1035 = vunpack.c.l.b16 %v1001
    %v1036 = vunpack.c.h.b16 %v1001
    %v1037 = vunpack.c.l.b16 %v1002
    %v1038 = vunpack.c.h.b16 %v1002
    %v1039 = vunpack.c.l.b16 %v1003
    %v1040 = vunpack.c.h.b16 %v1003
    %v1041 = vunpack.c.l.b16 %v1004
    %v1042 = vunpack.c.h.b16 %v1004
    %v1043 = vunpack.c.l.b16 %v1005
    %v1044 = vunpack.c.h.b16 %v1005
    %v1045 = vunpack.c.l.b16 %v1006
    %v1046 = vunpack.c.h.b16 %v1006
    %v1047 = vunpack.c.l.b16 %v1007
    %v1048 = vunpack.c.h.b16 %v1007
    %v1049 = vunpack.c.l.b16 %v1008
    %v1050 = vunpack.c.h.b16 %v1008
    %v1051 = vunpack.c.l.b16 %v1009
    %v1052 = vunpack.c.h.b16 %v1009
    %v1053 = vunpack.c.l.b16 %v1010
    %v1054 = vunpack.c.h.b16 %v1010
    %v1055 = vunpack.c.l.b16 %v1011
    %v1056 = vunpack.c.h.b16 %v1011
    %v1057 = vunpack.c.l.b16 %v1012
    %v1058 = vunpack.c.h.b16 %v1012
    %v1059 = vunpack.c.l.b16 %v1013
    %v1060 = vunpack.c.h.b16 %v1013
    %v1061 = vunpack.c.l.b16 %v1014
    %v1062 = vunpack.c.h.b16 %v1014
    %v1063 = vpack.c.b16 %v1033, %v1031
    %v1064 = vpack.c.b16 %v1034, %v1032
    %v1065 = vpack.c.b16 %v1037, %v1035
    %v1066 = vpack.c.b16 %v1038, %v1036
    %v1067 = vpack.c.b16 %v1041, %v1039
    %v1068 = vpack.c.b16 %v1042, %v1040
    %v1069 = vpack.c.b16 %v1045, %v1043
    %v1070 = vpack.c.b16 %v1046, %v1044
    %v1071 = vpack.c.b16 %v1049, %v1047
    %v1072 = vpack.c.b16 %v1050, %v1048
    %v1073 = vpack.c.b16 %v1053, %v1051
    %v1074 = vpack.c.b16 %v1054, %v1052
    %v1075 = vpack.c.b16 %v1057, %v1055
    %v1076 = vpack.c.b16 %v1058, %v1056
    %v1077 = vpack.c.b16 %v1061, %v1059
    %v1078 = vpack.c.b16 %v1062, %v1060
    %1095 = vmatprep.subr.bf16.mxu0 %v1064
    %1096 = vmatpush1.bf16.msra.mxu0 %v1063
    %1097 = vmatprep.subr.bf16.mxu0 %v1066
    %1098 = vmatpush1.bf16.msra.mxu0 %v1065
    %1099 = vmatprep.subr.bf16.mxu0 %v1068
    %1100 = vmatpush1.bf16.msra.mxu0 %v1067
    %1101 = vmatprep.subr.bf16.mxu0 %v1070
    %1102 = vmatpush1.bf16.msra.mxu0 %v1069
    %1103 = vmatprep.subr.bf16.mxu0 %v1072
    %1104 = vmatpush1.bf16.msra.mxu0 %v1071
    %1105 = vmatprep.subr.bf16.mxu0 %v1074
    %1106 = vmatpush1.bf16.msra.mxu0 %v1073
    %1107 = vmatprep.subr.bf16.mxu0 %v1076
    %1108 = vmatpush1.bf16.msra.mxu0 %v1075
    %1109 = vmatprep.subr.bf16.mxu0 %v1078
    %1110 = vmatpush1.bf16.msra.mxu0 %v1077
    %1111 = vmatprep.subr.bf16.mxu0 0
    %1112 = vmatpush1.bf16.msra.mxu0 0
    %1113 = vmatprep.subr.bf16.mxu0 0
    %1114 = vmatpush1.bf16.msra.mxu0 0
    %1115 = vmatprep.subr.bf16.mxu0 0
    %1116 = vmatpush1.bf16.msra.mxu0 0
    %1117 = vmatprep.subr.bf16.mxu0 0
    %1118 = vmatpush1.bf16.msra.mxu0 0
    %1119 = vmatprep.subr.bf16.mxu0 0
    %1120 = vmatpush1.bf16.msra.mxu0 0
    %1121 = vmatprep.subr.bf16.mxu0 0
    %1122 = vmatpush1.bf16.msra.mxu0 0
    %1123 = vmatprep.subr.bf16.mxu0 0
    %1124 = vmatpush1.bf16.msra.mxu0 0
    %1125 = vmatprep.subr.bf16.mxu0 0
    %1126 = vmatpush1.bf16.msra.mxu0 0
    %1127 = vmatprep.mubr.bf16.mxu0 0
    %1128 = vmatmul.mubr.bf16.gmra.mrb[0].mxu0 %v996
    %v1129 = vpop.f32.mrb[0].mxu0
    %v1130 = vpop.f32.mrb[0].mxu0
    %v1131 = vadd.f32 0.0, %v1130
    %v1132 = vpop.f32.mrb[0].mxu0
    %v1133 = vpop.f32.mrb[0].mxu0
    %v1134 = vadd.f32 0.0, %v1133
    %1135 = vmatprep.mubr.bf16.mxu0 0
    %1136 = vmatmul.mubr.bf16.gmra.mrb[0].mxu0 %v997
    %v1137 = vpop.f32.mrb[0].mxu0
    %v1138 = vpop.f32.mrb[0].mxu0
    %v1139 = vadd.f32 0.0, %v1138
    %v1140 = vpop.f32.mrb[0].mxu0
    %v1141 = vpop.f32.mrb[0].mxu0
    %v1142 = vadd.f32 0.0, %v1141
    %1143 = vdwg.mxu0
    %v1144 = vadd.f32 %v815, %v1131
    %v1145 = vadd.f32 %v816, %v1134
    %v1146 = vadd.f32 %v817, %v1139
    %v1147 = vadd.f32 %v818, %v1142
    %v1148 = vld [vmem:[#allocation5] sm:$0xf]
    %v1149 = vld [vmem:[#allocation5 + $0x4] sm:$0xf]
    %v1150 = vpack.c.bf16 %v1145, %v1144
    %v1151 = vpack.c.bf16 %v1147, %v1146
    %v1154 = vunpack.c.l.b16 %v1148
    %v1155 = vunpack.c.l.b16 %v1149
    %v1156 = vpack.c.b16 %v1155, %v1154
    %v1158 = vsel %vm126, %v1156, 0
    %1160 = vmatprep.subr.bf16.mxu0 0
    %1161 = vmatpush1.bf16.msra.mxu0 %v1150
    %1162 = vmatprep.subr.bf16.mxu0 0
    %1163 = vmatpush1.bf16.msra.mxu0 %v1151
    %1164 = vmatprep.subr.bf16.mxu0 0
    %1165 = vmatpush1.bf16.msra.mxu0 0
    %1166 = vmatprep.subr.bf16.mxu0 0
    %1167 = vmatpush1.bf16.msra.mxu0 0
    %1168 = vmatprep.subr.bf16.mxu0 0
    %1169 = vmatpush1.bf16.msra.mxu0 0
    %1170 = vmatprep.subr.bf16.mxu0 0
    %1171 = vmatpush1.bf16.msra.mxu0 0
    %1172 = vmatprep.subr.bf16.mxu0 0
    %1173 = vmatpush1.bf16.msra.mxu0 0
    %1174 = vmatprep.subr.bf16.mxu0 0
    %1175 = vmatpush1.bf16.msra.mxu0 0
    %1176 = vmatprep.subr.bf16.mxu0 0
    %1177 = vmatpush1.bf16.msra.mxu0 0
    %1178 = vmatprep.subr.bf16.mxu0 0
    %1179 = vmatpush1.bf16.msra.mxu0 0
    %1180 = vmatprep.subr.bf16.mxu0 0
    %1181 = vmatpush1.bf16.msra.mxu0 0
    %1182 = vmatprep.subr.bf16.mxu0 0
    %1183 = vmatpush1.bf16.msra.mxu0 0
    %1184 = vmatprep.subr.bf16.mxu0 0
    %1185 = vmatpush1.bf16.msra.mxu0 0
    %1186 = vmatprep.subr.bf16.mxu0 0
    %1187 = vmatpush1.bf16.msra.mxu0 0
    %1188 = vmatprep.subr.bf16.mxu0 0
    %1189 = vmatpush1.bf16.msra.mxu0 0
    %1190 = vmatprep.subr.bf16.mxu0 0
    %1191 = vmatpush1.bf16.msra.mxu0 0
    %1192 = vmatprep.mubr.bf16.mxu0 0
    %1193 = vmatmul.mubr.bf16.gmra.mrb[0].mxu0 %v1158
    %v1194 = vpop.f32.mrb[0].mxu0
    %v1195 = vadd.f32 0.0, %v1194
    %v1196 = vpop.f32.mrb[0].mxu0
    %v1197 = vpop.f32.mrb[0].mxu0
    %v1198 = vadd.f32 0.0, %v1197
    %v1199 = vpop.f32.mrb[0].mxu0
    %1200 = vdwg.mxu0
    %1201 = vst [vmem:[#allocation11] sm:$0xff] %v1195
    %1202 = vst [vmem:[#allocation11 + $0x8] sm:$0xff] %v1198
    // Predicated region
    $region50: #{tpu_custom_call.1} parent=1 // pred_check
      _
    $region51: #{tpu_custom_call.1} parent=1 // pred_check_branch
      %1204 = sbr.rel (0) target = $region53
    $region52: #{tpu_custom_call.1} parent=1 // pred_region
      %s1206 = ssub.s32 256, 256
      %1207 = vsyncadd [#allocation4], %s1206
      %s1208 = sshll.u32 [#allocation11], 4
      %s1209 = int_to_ptr.vmem [resolvable:$true] %s1208
      %1214 = dma.vmem_to_hbm [thread:$0]  %s1209, 256, %s7, [#allocation4], 128, 128, 8
    $region53: #{tpu_custom_call.1} parent=1 // pred_fallthru
      _
    // Predicated region
    $region54: #{tpu_custom_call.1} parent=1 // pred_check
      _
    $region55: #{tpu_custom_call.1} parent=1 // pred_check_branch
      %1216 = sbr.rel (0) target = $region57
    $region56: #{tpu_custom_call.1} parent=1 // pred_region
      %1217 = dma.done [#allocation4], 256
    $region57: #{tpu_custom_call.1} parent=1 // pred_fallthru
      _
    %1218 = vsyncpa [#allocation3], 1
    %1219 = vsyncpa [#allocation6], 1
    %1220 = vsyncpa [#allocation9], 1
    %1221 = vsyncpa [#allocation4], 1

</llo_original>
